<compile_context>
chip_gen: v7x
topology: tpu7x:2x2x1
jax: 0.10.0
libtpu: 0.0.40
codegen_flags: <defaults>
</compile_context>

<pallas_src>
import functools

import jax
import jax.numpy as jnp
from jax.experimental import pallas as pl
from jax.experimental.pallas import tpu as pltpu

STATE_DIM = 16                               # base_model.state_dim
ACTION_DIM = 4                               # base_model.action_dim (control)
HALL_ACTION_DIM = ACTION_DIM + STATE_DIM     # hallucinated action dim = 20
IN_DIM = STATE_DIM + ACTION_DIM              # fused layer-1 input dim = 20
HIDDEN = 32
OUT2 = 2 * STATE_DIM                         # fused head output dim = 32
BETA = 1.0
LANE = 128


def _round_up(x, m):
    return (x + m - 1) // m * m


def _stable_softplus(x):
    # softplus that does not overflow for large x (f32 exp overflows ~88).
    return jnp.where(x > 20.0, x, jnp.log1p(jnp.exp(jnp.minimum(x, 20.0))))


def hallucinated_kernel(x_ref, optim_ref, w1_ref, b1_ref, w2_ref, b2_ref,
                        out_ref):
    """Feature-major tiles: last dim is the (lane-dense) batch tile.

    x_ref     (IN_DIM=20, TB) bf16   -- [state; control] stacked on features
    optim_ref (STATE_DIM, TB) bf16
    w1_ref    (HIDDEN, IN_DIM)  bf16 (VMEM-resident)
    b1_ref    (HIDDEN, 1)       f32  (VMEM-resident)
    w2_ref    (OUT2, HIDDEN)    bf16 (VMEM-resident; rows 0..15 mean head,
                                      rows 16..31 stddev head)
    b2_ref    (OUT2, 1)         f32  (VMEM-resident)
    out_ref   (STATE_DIM, TB)   f32
    """
    # Layer 1: single fused MXU matmul, f32 accumulation.
    h = jnp.dot(w1_ref[...], x_ref[...],
                preferred_element_type=jnp.float32) + b1_ref[...]
    h = jnp.maximum(h, 0.0).astype(jnp.bfloat16)

    # Layer 2: single fused head matmul; split mean/raw_std on the sublane
    # axis at row 16 (8-aligned -> free in this layout).
    heads = jnp.dot(w2_ref[...], h,
                    preferred_element_type=jnp.float32) + b2_ref[...]
    mean = heads[:STATE_DIM, :]
    stddev = _stable_softplus(heads[STATE_DIM:, :])

    # HallucinatedModel combine (elementwise tail in f32).
    optimism = jnp.clip(optim_ref[...].astype(jnp.float32), -1.0, 1.0)
    out_ref[...] = mean + BETA * (optimism * jnp.sqrt(stddev))


@functools.partial(jax.jit, static_argnames=("batch_tile",))
def hallucinated_forward(state, action, params, *, batch_tile=2048):
    """state: (B, STATE_DIM) f32, action: (B, ACTION_DIM+STATE_DIM) f32."""
    w1s, w1a, b1, w2, b2 = params
    batch = state.shape[0]

    # ---- layout plumbing (fused by jit into one pass, no extra HBM trips) --
    # fused layer-1 input: [state | control] -> feature-major (20, B) bf16
    x_t = jnp.concatenate([state, action[:, :ACTION_DIM]],
                          axis=1).T.astype(jnp.bfloat16)          # (20, B)
    optim_t = action[:, ACTION_DIM:].T.astype(jnp.bfloat16)       # (16, B)

    # fused, transposed weights (bf16); biases stay f32 as (feature, 1)
    w1_t = jnp.concatenate([w1s, w1a], axis=0).T.astype(jnp.bfloat16)  # (32,20)
    b1_c = b1.reshape(HIDDEN, 1)                                       # (32,1)
    w2_t = w2.T.astype(jnp.bfloat16)                                   # (32,32)
    b2_c = b2.reshape(OUT2, 1)                                         # (32,1)

    # batch tile: lane multiple, capped at ~B/2 so grid >= 2 tiles when
    # possible (lets ("parallel",) shard across both TCs on v7x).
    half = _round_up(pl.cdiv(batch, 2), LANE)
    tb = max(LANE, min(batch_tile, half))
    grid = (pl.cdiv(batch, tb),)        # partial last block is masked by Pallas

    def batch_tile_spec(rows):
        return pl.BlockSpec((rows, tb), lambda i: (0, i))

    def resident(shape):
        return pl.BlockSpec(shape, lambda i: (0, 0))

    out_t = pl.pallas_call(
        hallucinated_kernel,
        out_shape=jax.ShapeDtypeStruct((STATE_DIM, batch), jnp.float32),
        grid_spec=pltpu.PrefetchScalarGridSpec(
            num_scalar_prefetch=0,
            grid=grid,
            in_specs=[
                batch_tile_spec(IN_DIM),        # [state; control]^T
                batch_tile_spec(STATE_DIM),     # optimism^T
                resident((HIDDEN, IN_DIM)),     # w1^T (fused)
                resident((HIDDEN, 1)),          # b1
                resident((OUT2, HIDDEN)),       # w2^T (fused heads)
                resident((OUT2, 1)),            # b2
            ],
            out_specs=batch_tile_spec(STATE_DIM),
        ),
        compiler_params=pltpu.CompilerParams(
            dimension_semantics=("parallel",),
        ),
    )(x_t, optim_t, w1_t, b1_c, w2_t, b2_c)

    return out_t.T                              # back to (B, STATE_DIM)


def reference_forward(state, action, params):
    """Pure-JAX reference of the exact computation the kernel performs
    (same bf16 matmul operands / bf16 optimism stream, f32 accumulation,
    f32 elementwise tail)."""
    w1s, w1a, b1, w2, b2 = params
    x = jnp.concatenate([state, action[:, :ACTION_DIM]],
                        axis=1).astype(jnp.bfloat16)
    w1 = jnp.concatenate([w1s, w1a], axis=0).astype(jnp.bfloat16)
    h = jnp.dot(x, w1, preferred_element_type=jnp.float32) + b1
    h = jnp.maximum(h, 0.0).astype(jnp.bfloat16)
    out = jnp.dot(h, w2.astype(jnp.bfloat16),
                  preferred_element_type=jnp.float32) + b2
    mean = out[:, :STATE_DIM]
    stddev = _stable_softplus(out[:, STATE_DIM:])
    optimism = jnp.clip(
        action[:, ACTION_DIM:].astype(jnp.bfloat16).astype(jnp.float32),
        -1.0, 1.0)
    return mean + BETA * (optimism * jnp.sqrt(stddev))


def init_params(key):
    k1, k2, k3, k4, k5 = jax.random.split(key, 5)
    w1s = jax.random.normal(k1, (STATE_DIM, HIDDEN), jnp.float32) * 0.1
    w1a = jax.random.normal(k2, (ACTION_DIM, HIDDEN), jnp.float32) * 0.1
    b1 = jax.random.normal(k3, (HIDDEN,), jnp.float32) * 0.01
    w2 = jax.random.normal(k4, (HIDDEN, 2 * STATE_DIM), jnp.float32) * 0.1
    b2 = jax.random.normal(k5, (2 * STATE_DIM,), jnp.float32) * 0.01
    return (w1s, w1a, b1, w2, b2)


if __name__ == "__main__":
    key = jax.random.PRNGKey(0)
    kp, ks, ka = jax.random.split(key, 3)

    # batch deliberately not a lane multiple: exercises the partial trailing
    # block (no host pad) and the 2-tile grid path.
    batch = 200
    params = init_params(kp)
    state = jax.random.normal(ks, (batch, STATE_DIM), jnp.float32)
    action = jax.random.normal(ka, (batch, HALL_ACTION_DIM), jnp.float32)

    out = jax.block_until_ready(hallucinated_forward(state, action, params))
    ref = reference_forward(state, action, params)

    assert out.shape == (batch, STATE_DIM)
    assert jnp.allclose(out, ref, atol=1e-3, rtol=1e-3), "mismatch vs reference"

    # TODO(synk): train_model / forward_seprate / forward_single are host-side
    # training / convenience paths (optimizer loop, python control flow) and
    # are not kernel material; base_model is unspecified and synthesized here
    # as a small MLP with a softplus stddev head.
    print("KERNEL_OK")
</pallas_src>

<mosaic_0001>
module attributes {stable_mosaic.version = 11 : i64} {
  func.func @hallucinated_kernel(%arg0: i32, %arg1: memref<20x128xbf16, #tpu.memory_space<vmem>>, %arg2: memref<16x128xbf16, #tpu.memory_space<vmem>>, %arg3: memref<32x20xbf16, #tpu.memory_space<vmem>>, %arg4: memref<32x1xf32, #tpu.memory_space<vmem>>, %arg5: memref<32x32xbf16, #tpu.memory_space<vmem>>, %arg6: memref<32x1xf32, #tpu.memory_space<vmem>>, %arg7: memref<16x128xf32, #tpu.memory_space<vmem>>) attributes {dimension_semantics = [#tpu.dimension_semantics<parallel>], iteration_bounds = array<i64: 2>, scalar_prefetch = 0 : i64, scratch_operands = 0 : i64, tpu.core_type = #tpu.core_type<tc>, window_params = [{transform_indices = @transform_0, window_bounds = array<i64: 20, 128>}, {transform_indices = @transform_1, window_bounds = array<i64: 16, 128>}, {pipeline_mode = #tpu.pipeline_mode<synchronous>, transform_indices = @transform_2, window_bounds = array<i64: 32, 20>}, {pipeline_mode = #tpu.pipeline_mode<synchronous>, transform_indices = @transform_3, window_bounds = array<i64: 32, 1>}, {pipeline_mode = #tpu.pipeline_mode<synchronous>, transform_indices = @transform_4, window_bounds = array<i64: 32, 32>}, {pipeline_mode = #tpu.pipeline_mode<synchronous>, transform_indices = @transform_5, window_bounds = array<i64: 32, 1>}, {transform_indices = @transform_6, window_bounds = array<i64: 16, 128>}]} {
    %c0 = arith.constant 0 : index
    %c0_0 = arith.constant 0 : index
    %0 = vector.load %arg3[%c0, %c0_0] : memref<32x20xbf16, #tpu.memory_space<vmem>>, vector<32x20xbf16>
    %c0_1 = arith.constant 0 : index
    %c0_2 = arith.constant 0 : index
    %1 = vector.load %arg1[%c0_1, %c0_2] : memref<20x128xbf16, #tpu.memory_space<vmem>>, vector<20x128xbf16>
    %cst = arith.constant dense<0.000000e+00> : vector<32x128xf32>
    %2 = tpu.matmul %0, %1, %cst {dimension_numbers = #tpu.dot_dimension_numbers<[1], [0], [0], [1], [0, 0, 1, 1], [], []>} : vector<32x20xbf16>, vector<20x128xbf16>, vector<32x128xf32> -> vector<32x128xf32>
    %c0_3 = arith.constant 0 : index
    %c0_4 = arith.constant 0 : index
    %3 = vector.load %arg4[%c0_3, %c0_4] : memref<32x1xf32, #tpu.memory_space<vmem>>, vector<32x1xf32>
    %4 = vector.broadcast %3 : vector<32x1xf32> to vector<32x128xf32>
    %5 = arith.addf %2, %4 : vector<32x128xf32>
    %cst_5 = arith.constant 0.000000e+00 : f32
    %6 = vector.broadcast %cst_5 : f32 to vector<32x128xf32>
    %7 = arith.maximumf %5, %6 : vector<32x128xf32>
    %8 = arith.truncf %7 : vector<32x128xf32> to vector<32x128xbf16>
    %c0_6 = arith.constant 0 : index
    %c0_7 = arith.constant 0 : index
    %9 = vector.load %arg5[%c0_6, %c0_7] : memref<32x32xbf16, #tpu.memory_space<vmem>>, vector<32x32xbf16>
    %cst_8 = arith.constant dense<0.000000e+00> : vector<32x128xf32>
    %10 = tpu.matmul %9, %8, %cst_8 {dimension_numbers = #tpu.dot_dimension_numbers<[1], [0], [0], [1], [0, 0, 1, 1], [], []>} : vector<32x32xbf16>, vector<32x128xbf16>, vector<32x128xf32> -> vector<32x128xf32>
    %c0_9 = arith.constant 0 : index
    %c0_10 = arith.constant 0 : index
    %11 = vector.load %arg6[%c0_9, %c0_10] : memref<32x1xf32, #tpu.memory_space<vmem>>, vector<32x1xf32>
    %12 = vector.broadcast %11 : vector<32x1xf32> to vector<32x128xf32>
    %13 = arith.addf %10, %12 : vector<32x128xf32>
    %14 = vector.extract_strided_slice %13 {offsets = [0, 0], sizes = [16, 128], strides = [1, 1]} : vector<32x128xf32> to vector<16x128xf32>
    %15 = vector.extract_strided_slice %13 {offsets = [16, 0], sizes = [16, 128], strides = [1, 1]} : vector<32x128xf32> to vector<16x128xf32>
    %cst_11 = arith.constant 2.000000e+01 : f32
    %16 = vector.broadcast %cst_11 : f32 to vector<16x128xf32>
    %17 = arith.cmpf ogt, %15, %16 : vector<16x128xf32>
    %cst_12 = arith.constant 2.000000e+01 : f32
    %18 = vector.broadcast %cst_12 : f32 to vector<16x128xf32>
    %19 = arith.minimumf %15, %18 : vector<16x128xf32>
    %20 = math.exp %19 : vector<16x128xf32>
    %21 = math.log1p %20 : vector<16x128xf32>
    %22 = arith.select %17, %15, %21 : vector<16x128xi1>, vector<16x128xf32>
    %c0_13 = arith.constant 0 : index
    %c0_14 = arith.constant 0 : index
    %23 = vector.load %arg2[%c0_13, %c0_14] : memref<16x128xbf16, #tpu.memory_space<vmem>>, vector<16x128xbf16>
    %24 = arith.extf %23 : vector<16x128xbf16> to vector<16x128xf32>
    %cst_15 = arith.constant -1.000000e+00 : f32
    %cst_16 = arith.constant 1.000000e+00 : f32
    %25 = vector.broadcast %cst_15 : f32 to vector<16x128xf32>
    %26 = arith.maximumf %25, %24 : vector<16x128xf32>
    %27 = vector.broadcast %cst_16 : f32 to vector<16x128xf32>
    %28 = arith.minimumf %27, %26 : vector<16x128xf32>
    %29 = math.sqrt %22 : vector<16x128xf32>
    %30 = arith.mulf %28, %29 : vector<16x128xf32>
    %cst_17 = arith.constant 1.000000e+00 : f32
    %31 = vector.broadcast %cst_17 : f32 to vector<16x128xf32>
    %32 = arith.mulf %31, %30 : vector<16x128xf32>
    %33 = arith.addf %14, %32 : vector<16x128xf32>
    %c0_18 = arith.constant 0 : index
    %c0_19 = arith.constant 0 : index
    %34 = vector.load %arg7[%c0_18, %c0_19] : memref<16x128xf32, #tpu.memory_space<vmem>>, vector<16x128xf32>
    tpu.vector_store %arg7[%c0_18, %c0_19], %33 {strides = array<i32>} : memref<16x128xf32, #tpu.memory_space<vmem>>, vector<16x128xf32>,
    return
  }
  func.func @transform_0(%arg0: i32) -> (i32, i32) {
    %c0_i32 = arith.constant 0 : i32
    %c0_i32_0 = arith.constant 0 : i32
    return %c0_i32, %arg0 : i32, i32
  }
  func.func @transform_1(%arg0: i32) -> (i32, i32) {
    %c0_i32 = arith.constant 0 : i32
    %c0_i32_0 = arith.constant 0 : i32
    return %c0_i32, %arg0 : i32, i32
  }
  func.func @transform_2(%arg0: i32) -> (i32, i32) {
    %c0_i32 = arith.constant 0 : i32
    %c0_i32_0 = arith.constant 0 : i32
    %c0_i32_1 = arith.constant 0 : i32
    return %c0_i32, %c0_i32_0 : i32, i32
  }
  func.func @transform_3(%arg0: i32) -> (i32, i32) {
    %c0_i32 = arith.constant 0 : i32
    %c0_i32_0 = arith.constant 0 : i32
    %c0_i32_1 = arith.constant 0 : i32
    return %c0_i32, %c0_i32_0 : i32, i32
  }
  func.func @transform_4(%arg0: i32) -> (i32, i32) {
    %c0_i32 = arith.constant 0 : i32
    %c0_i32_0 = arith.constant 0 : i32
    %c0_i32_1 = arith.constant 0 : i32
    return %c0_i32, %c0_i32_0 : i32, i32
  }
  func.func @transform_5(%arg0: i32) -> (i32, i32) {
    %c0_i32 = arith.constant 0 : i32
    %c0_i32_0 = arith.constant 0 : i32
    %c0_i32_1 = arith.constant 0 : i32
    return %c0_i32, %c0_i32_0 : i32, i32
  }
  func.func @transform_6(%arg0: i32) -> (i32, i32) {
    %c0_i32 = arith.constant 0 : i32
    %c0_i32_0 = arith.constant 0 : i32
    return %c0_i32, %arg0 : i32, i32
  }
}

</mosaic_0001>

<llo_original>
// kernel: hallucinated_forward.1
$region0: #{hallucinated_forward.1}
  #allocation0 [shape = 'u32[]', space=smem, size = 0x4, offset = 0x4, fixed_abs, tag = 'smem constant byte address 0x4 - core index']
  #allocation1 [shape = 'u32[144,128]{1,0:T(1,128)}', space=vmem, size = 0x12000, scoped, tag = 'internal scratch']
  %s0 = inlined_call_operand.vmem [shape: bf16[20,200], index: 0, kind: input, shape index: {}]
  %s1 = inlined_call_operand.vmem [shape: bf16[16,200], index: 1, kind: input, shape index: {}]
  %s2 = inlined_call_operand.vmem [shape: bf16[32,20], index: 2, kind: input, shape index: {}]
  %s3 = inlined_call_operand.vmem [shape: f32[32,1], index: 3, kind: input, shape index: {}]
  %s4 = inlined_call_operand.vmem [shape: bf16[32,32], index: 4, kind: input, shape index: {}]
  %s5 = inlined_call_operand.vmem [shape: f32[32,1], index: 5, kind: input, shape index: {}]
  %s6 = inlined_call_operand.hbm [shape: f32[16,200], index: 6, kind: output, shape index: {}]
  %s7 = sld [smem:[#allocation0]]
  $region139: #{hallucinated_forward.1} parent=0
    _
  %s9 = ssub.s32 1, %s7
  %s10 = scalar_select 0, %s9, %s7
  $region1: #{hallucinated_forward.1} parent=0
    #allocation2 [shape = 'u8[12288]{0}', space=vmem, size = 0x3000, scoped, tag = 'input window, operand 0']
    #allocation3 [shape = 'u8[8192]{0}', space=vmem, size = 0x2000, scoped, tag = 'input window, operand 1']
    #allocation4 [shape = 'u8[16384]{0}', space=vmem, size = 0x4000, scoped, tag = 'output window, operand 0']
    #allocation5 [shape = 's32[2]{0}', space=sflag, size = 0x8, scoped, tag = 'scoped memory for hallucinated_forward.1']
    %11 = vsyncpa [#allocation5], 0
    %s12 = scalar_lea.sflag [#allocation5], 1
    %13 = vsyncpa %s12, 0
    loop: start=0, step=1, limit=4
    $region2: #{hallucinated_forward.1} parent=1 // loop_pre_header
      _
    $region3: #{hallucinated_forward.1} parent=1 // loop_header
      %s15 = sphi 0, %s19
      %p16 = scmp.ge.s32.totalorder %s15, 4
      %s25 = sphi 0, %s27
      %s28 = sphi 0, %s25
      %s29 = sphi 0, %s28
      %s45 = sphi 0, %s29
      %s51 = sphi 0, %s53
      %s54 = sphi 0, %s51
      %s55 = sphi 0, %s54
      %s71 = sphi 0, %s55
      %s75 = sphi 0, %s75
      %s77 = sphi 0, %s75
      %s78 = sphi 0, %s77
      %s92 = sphi 0, %s78
      %s96 = sphi 0, %s96
      %s98 = sphi 0, %s96
      %s99 = sphi 0, %s98
      %s113 = sphi 0, %s99
      %s117 = sphi 0, %s117
      %s119 = sphi 0, %s117
      %s120 = sphi 0, %s119
      %s134 = sphi 0, %s120
      %s138 = sphi 0, %s138
      %s140 = sphi 0, %s138
      %s141 = sphi 0, %s140
      %s155 = sphi 0, %s141
      %s161 = sphi 0, %s163
      %s164 = sphi 0, %s161
      %s165 = sphi 0, %s164
      %s181 = sphi 0, %s165
    $region4: #{hallucinated_forward.1} parent=1 // loop_header_branch
      %18 = sbr.rel (%p16) target = $region8
    $region5: #{hallucinated_forward.1} parent=1 // loop_body
      %s20 = ssub.s32 %s15, 1
      %s21 = ssub.s32 %s15, 2
      %s22 = sadd.s32 %s15, 1
      %s23 = ssub.s32 %s15, %s22
      %p24 = scmp.eq.s32.totalorder %s23, 0
      %s26 = sadd.s32 %s25, 1
      %s27 = scalar_select %p24, %s25, %s26
      %p30 = pneg %p24
      %p31 = scmp.eq.s32.totalorder %s15, 1
      %p32 = por %p30, %p31
      %p33 = scmp.ne.s32.totalorder %s25, %s28
      %p34 = scmp.eq.s32.totalorder %s15, 0
      %p35 = por %p33, %p34
      %p36 = scmp.ne.s32.totalorder %s25, %s28
      %p37 = scmp.eq.s32.totalorder %s20, 1
      %p38 = por %p36, %p37
      %p39 = scmp.ne.s32.totalorder %s28, %s29
      %p40 = scmp.eq.s32.totalorder %s20, 0
      %p41 = por %p39, %p40
      %p42 = scmp.ne.s32.totalorder %s28, %s29
      %p43 = scmp.eq.s32.totalorder %s21, 1
      %p44 = por %p42, %p43
      %p46 = scmp.ne.s32.totalorder %s29, %s45
      %p47 = scmp.eq.s32.totalorder %s21, 0
      %p48 = por %p46, %p47
      %s49 = ssub.s32 %s15, %s22
      %p50 = scmp.eq.s32.totalorder %s49, 0
      %s52 = sadd.s32 %s51, 1
      %s53 = scalar_select %p50, %s51, %s52
      %p56 = pneg %p50
      %p57 = scmp.eq.s32.totalorder %s15, 1
      %p58 = por %p56, %p57
      %p59 = scmp.ne.s32.totalorder %s51, %s54
      %p60 = scmp.eq.s32.totalorder %s15, 0
      %p61 = por %p59, %p60
      %p62 = scmp.ne.s32.totalorder %s51, %s54
      %p63 = scmp.eq.s32.totalorder %s20, 1
      %p64 = por %p62, %p63
      %p65 = scmp.ne.s32.totalorder %s54, %s55
      %p66 = scmp.eq.s32.totalorder %s20, 0
      %p67 = por %p65, %p66
      %p68 = scmp.ne.s32.totalorder %s54, %s55
      %p69 = scmp.eq.s32.totalorder %s21, 1
      %p70 = por %p68, %p69
      %p72 = scmp.ne.s32.totalorder %s55, %s71
      %p73 = scmp.eq.s32.totalorder %s21, 0
      %p74 = por %p72, %p73
      %s76 = sadd.s32 %s75, 1
      %p79 = scmp.eq.s32.totalorder %s15, 1
      %p80 = scmp.ne.s32.totalorder %s75, %s77
      %p81 = scmp.eq.s32.totalorder %s15, 0
      %p82 = por %p80, %p81
      %p83 = scmp.ne.s32.totalorder %s75, %s77
      %p84 = scmp.eq.s32.totalorder %s20, 1
      %p85 = por %p83, %p84
      %p86 = scmp.ne.s32.totalorder %s77, %s78
      %p87 = scmp.eq.s32.totalorder %s20, 0
      %p88 = por %p86, %p87
      %p89 = scmp.ne.s32.totalorder %s77, %s78
      %p90 = scmp.eq.s32.totalorder %s21, 1
      %p91 = por %p89, %p90
      %p93 = scmp.ne.s32.totalorder %s78, %s92
      %p94 = scmp.eq.s32.totalorder %s21, 0
      %p95 = por %p93, %p94
      %s97 = sadd.s32 %s96, 1
      %p100 = scmp.eq.s32.totalorder %s15, 1
      %p101 = scmp.ne.s32.totalorder %s96, %s98
      %p102 = scmp.eq.s32.totalorder %s15, 0
      %p103 = por %p101, %p102
      %p104 = scmp.ne.s32.totalorder %s96, %s98
      %p105 = scmp.eq.s32.totalorder %s20, 1
      %p106 = por %p104, %p105
      %p107 = scmp.ne.s32.totalorder %s98, %s99
      %p108 = scmp.eq.s32.totalorder %s20, 0
      %p109 = por %p107, %p108
      %p110 = scmp.ne.s32.totalorder %s98, %s99
      %p111 = scmp.eq.s32.totalorder %s21, 1
      %p112 = por %p110, %p111
      %p114 = scmp.ne.s32.totalorder %s99, %s113
      %p115 = scmp.eq.s32.totalorder %s21, 0
      %p116 = por %p114, %p115
      %s118 = sadd.s32 %s117, 1
      %p121 = scmp.eq.s32.totalorder %s15, 1
      %p122 = scmp.ne.s32.totalorder %s117, %s119
      %p123 = scmp.eq.s32.totalorder %s15, 0
      %p124 = por %p122, %p123
      %p125 = scmp.ne.s32.totalorder %s117, %s119
      %p126 = scmp.eq.s32.totalorder %s20, 1
      %p127 = por %p125, %p126
      %p128 = scmp.ne.s32.totalorder %s119, %s120
      %p129 = scmp.eq.s32.totalorder %s20, 0
      %p130 = por %p128, %p129
      %p131 = scmp.ne.s32.totalorder %s119, %s120
      %p132 = scmp.eq.s32.totalorder %s21, 1
      %p133 = por %p131, %p132
      %p135 = scmp.ne.s32.totalorder %s120, %s134
      %p136 = scmp.eq.s32.totalorder %s21, 0
      %p137 = por %p135, %p136
      %s139 = sadd.s32 %s138, 1
      %p142 = scmp.eq.s32.totalorder %s15, 1
      %p143 = scmp.ne.s32.totalorder %s138, %s140
      %p144 = scmp.eq.s32.totalorder %s15, 0
      %p145 = por %p143, %p144
      %p146 = scmp.ne.s32.totalorder %s138, %s140
      %p147 = scmp.eq.s32.totalorder %s20, 1
      %p148 = por %p146, %p147
      %p149 = scmp.ne.s32.totalorder %s140, %s141
      %p150 = scmp.eq.s32.totalorder %s20, 0
      %p151 = por %p149, %p150
      %p152 = scmp.ne.s32.totalorder %s140, %s141
      %p153 = scmp.eq.s32.totalorder %s21, 1
      %p154 = por %p152, %p153
      %p156 = scmp.ne.s32.totalorder %s141, %s155
      %p157 = scmp.eq.s32.totalorder %s21, 0
      %p158 = por %p156, %p157
      %s159 = ssub.s32 %s15, %s22
      %p160 = scmp.eq.s32.totalorder %s159, 0
      %s162 = sadd.s32 %s161, 1
      %s163 = scalar_select %p160, %s161, %s162
      %p166 = pneg %p160
      %p167 = scmp.eq.s32.totalorder %s15, 1
      %p168 = por %p166, %p167
      %p169 = scmp.ne.s32.totalorder %s161, %s164
      %p170 = scmp.eq.s32.totalorder %s15, 0
      %p171 = por %p169, %p170
      %p172 = scmp.ne.s32.totalorder %s161, %s164
      %p173 = scmp.eq.s32.totalorder %s20, 1
      %p174 = por %p172, %p173
      %p175 = scmp.ne.s32.totalorder %s164, %s165
      %p176 = scmp.eq.s32.totalorder %s20, 0
      %p177 = por %p175, %p176
      %p178 = scmp.ne.s32.totalorder %s164, %s165
      %p179 = scmp.eq.s32.totalorder %s21, 1
      %p180 = por %p178, %p179
      %p182 = scmp.ne.s32.totalorder %s165, %s181
      %p183 = scmp.eq.s32.totalorder %s21, 0
      %p184 = por %p182, %p183
      %p185 = scmp.le.s32.totalorder 1, %s15
      %p186 = scmp.lt.s32.totalorder %s15, 3
      %p187 = pnand %p185, %p186
      %p188 = pneg %p187
      // Predicated region
      $region9: #{hallucinated_forward.1} parent=5 // pred_check
        _
      $region10: #{hallucinated_forward.1} parent=5 // pred_check_branch
        %190 = sbr.rel (%p187) target = $region12
      $region11: #{hallucinated_forward.1} parent=5 // pred_region
        %s191 = ssub.s32 %s15, 1
        // Predicated region
        $region13: #{hallucinated_forward.1} parent=11 // pred_check
          %p192 = pneg %p88
        $region14: #{hallucinated_forward.1} parent=11 // pred_check_branch
          %194 = sbr.rel (%p192) target = $region16
        $region15: #{hallucinated_forward.1} parent=11 // pred_region
          _
        $region16: #{hallucinated_forward.1} parent=11 // pred_fallthru
          _
        // Predicated region
        $region17: #{hallucinated_forward.1} parent=11 // pred_check
          %p195 = pneg %p109
        $region18: #{hallucinated_forward.1} parent=11 // pred_check_branch
          %197 = sbr.rel (%p195) target = $region20
        $region19: #{hallucinated_forward.1} parent=11 // pred_region
          _
        $region20: #{hallucinated_forward.1} parent=11 // pred_fallthru
          _
        // Predicated region
        $region21: #{hallucinated_forward.1} parent=11 // pred_check
          %p198 = pneg %p130
        $region22: #{hallucinated_forward.1} parent=11 // pred_check_branch
          %200 = sbr.rel (%p198) target = $region24
        $region23: #{hallucinated_forward.1} parent=11 // pred_region
          _
        $region24: #{hallucinated_forward.1} parent=11 // pred_fallthru
          _
        // Predicated region
        $region25: #{hallucinated_forward.1} parent=11 // pred_check
          %p201 = pneg %p151
        $region26: #{hallucinated_forward.1} parent=11 // pred_check_branch
          %203 = sbr.rel (%p201) target = $region28
        $region27: #{hallucinated_forward.1} parent=11 // pred_region
          _
        $region28: #{hallucinated_forward.1} parent=11 // pred_fallthru
          _
      $region12: #{hallucinated_forward.1} parent=5 // pred_fallthru
        _
      %p204 = scmp.lt.s32.totalorder %s15, 2
      // Predicated region
      $region29: #{hallucinated_forward.1} parent=5 // pred_check
        %p205 = pneg %p204
      $region30: #{hallucinated_forward.1} parent=5 // pred_check_branch
        %207 = sbr.rel (%p205) target = $region32
      $region31: #{hallucinated_forward.1} parent=5 // pred_region
        // Predicated region
        $region33: #{hallucinated_forward.1} parent=31 // pred_check
          %p208 = pneg %p35
        $region34: #{hallucinated_forward.1} parent=31 // pred_check_branch
          %210 = sbr.rel (%p208) target = $region36
        $region35: #{hallucinated_forward.1} parent=31 // pred_region
          %s211 = sand.u32 %s25, 1
          %s212 = sand.u32 %s25, 1
          %s213 = smul.addr %s212, 12
          %s214 = scalar_lea.vmem [#allocation2], %s213
          %s215 = smul.addr %s15, 4
          %s216 = scalar_lea.vmem %s0, %s215
          // Predicated region
          $region37: #{hallucinated_forward.1} parent=35 // pred_check
            _
          $region38: #{hallucinated_forward.1} parent=35 // pred_check_branch
            %218 = sbr.rel (0) target = $region40
          $region39: #{hallucinated_forward.1} parent=35 // pred_region
            // Predicated region
            $region41: #{hallucinated_forward.1} parent=39 // pred_check
              _
            $region42: #{hallucinated_forward.1} parent=39 // pred_check_branch
              %220 = sbr.rel target = $region44
            $region43: #{hallucinated_forward.1} parent=39 // pred_region
              // Predicated region
              $region56: #{hallucinated_forward.1} parent=43 // pred_check
                _
              $region57: #{hallucinated_forward.1} parent=43 // pred_check_branch
                %239 = sbr.rel (0) target = $region59
              $region58: #{hallucinated_forward.1} parent=43 // pred_region
                loop: start=0, step=1, limit=1
                $region60: #{hallucinated_forward.1} parent=58 // loop_pre_header
                  _
                $region61: #{hallucinated_forward.1} parent=58 // loop_header
                  %s241 = sphi 0, %s245
                  %p242 = scmp.ge.s32.totalorder %s241, 1
                  %s246 = sphi %s216, %s216
                  %s247 = sphi %s214, %s214
                $region62: #{hallucinated_forward.1} parent=58 // loop_header_branch
                  %244 = sbr.rel (%p242) target = $region66
                $region63: #{hallucinated_forward.1} parent=58 // loop_body
                  _
                $region64: #{hallucinated_forward.1} parent=58 // loop_footer
                  %s245 = sadd.s32 1, %s241
                $region65: #{hallucinated_forward.1} parent=58 // loop_footer_branch
                  %240 = sbr.rel target = $region61
                $region66: #{hallucinated_forward.1} parent=58 // loop_exit
                  _
                loop: start=0, step=1, limit=1
                $region67: #{hallucinated_forward.1} parent=58 // loop_pre_header
                  _
                $region68: #{hallucinated_forward.1} parent=58 // loop_header
                  %s250 = sphi 0, %s254
                  %p251 = scmp.ge.s32.totalorder %s250, 1
                  %s255 = sphi %s216, %s216
                  %s256 = sphi %s214, %s214
                $region69: #{hallucinated_forward.1} parent=58 // loop_header_branch
                  %253 = sbr.rel (%p251) target = $region73
                $region70: #{hallucinated_forward.1} parent=58 // loop_body
                  %v257 = vld [vmem:[%s255] sm:$0xf]
                  %258 = vst [vmem:[%s256] sm:$0xf] %v257
                  %v259 = vld [vmem:[%s255 + $0x8] sm:$0xf]
                  %260 = vst [vmem:[%s256 + $0x4] sm:$0xf] %v259
                  %v261 = vld [vmem:[%s255 + $0x10] sm:$0xf]
                  %262 = vst [vmem:[%s256 + $0x8] sm:$0xf] %v261
                $region71: #{hallucinated_forward.1} parent=58 // loop_footer
                  %s254 = sadd.s32 1, %s250
                $region72: #{hallucinated_forward.1} parent=58 // loop_footer_branch
                  %249 = sbr.rel target = $region68
                $region73: #{hallucinated_forward.1} parent=58 // loop_exit
                  _
              $region59: #{hallucinated_forward.1} parent=43 // pred_fallthru
                _
            $region44: #{hallucinated_forward.1} parent=39 // pred_fallthru
              _
            // Predicated region
            $region45: #{hallucinated_forward.1} parent=39 // pred_check
              _
            $region46: #{hallucinated_forward.1} parent=39 // pred_check_branch
              %222 = sbr.rel (0) target = $region48
            $region47: #{hallucinated_forward.1} parent=39 // pred_region
              loop: start=0, step=1, limit=1
              $region49: #{hallucinated_forward.1} parent=47 // loop_pre_header
                _
              $region50: #{hallucinated_forward.1} parent=47 // loop_header
                %s225 = sphi 0, %s229
                %p226 = scmp.ge.s32.totalorder %s225, 1
                %s230 = sphi %s216, %s216
                %s231 = sphi %s214, %s214
              $region51: #{hallucinated_forward.1} parent=47 // loop_header_branch
                %228 = sbr.rel (%p226) target = $region55
              $region52: #{hallucinated_forward.1} parent=47 // loop_body
                %v232 = vld [vmem:[%s230] sm:$0xf]
                %233 = vst [vmem:[%s231] sm:$0xf] %v232
                %v234 = vld [vmem:[%s230 + $0x8] sm:$0xf]
                %235 = vst [vmem:[%s231 + $0x4] sm:$0xf] %v234
                %v236 = vld [vmem:[%s230 + $0x10] sm:$0xf]
                %237 = vst [vmem:[%s231 + $0x8] sm:$0xf] %v236
              $region53: #{hallucinated_forward.1} parent=47 // loop_footer
                %s229 = sadd.s32 1, %s225
              $region54: #{hallucinated_forward.1} parent=47 // loop_footer_branch
                %224 = sbr.rel target = $region50
              $region55: #{hallucinated_forward.1} parent=47 // loop_exit
                _
            $region48: #{hallucinated_forward.1} parent=39 // pred_fallthru
              _
          $region40: #{hallucinated_forward.1} parent=35 // pred_fallthru
            _
          %263 = vnop
        $region36: #{hallucinated_forward.1} parent=31 // pred_fallthru
          _
        // Predicated region
        $region74: #{hallucinated_forward.1} parent=31 // pred_check
          %p264 = pneg %p61
        $region75: #{hallucinated_forward.1} parent=31 // pred_check_branch
          %266 = sbr.rel (%p264) target = $region77
        $region76: #{hallucinated_forward.1} parent=31 // pred_region
          %s267 = sand.u32 %s51, 1
          %s268 = sand.u32 %s51, 1
          %s269 = smul.addr %s268, 8
          %s270 = scalar_lea.vmem [#allocation3], %s269
          %s271 = smul.addr %s15, 4
          %s272 = scalar_lea.vmem %s1, %s271
          // Predicated region
          $region78: #{hallucinated_forward.1} parent=76 // pred_check
            _
          $region79: #{hallucinated_forward.1} parent=76 // pred_check_branch
            %274 = sbr.rel (0) target = $region81
          $region80: #{hallucinated_forward.1} parent=76 // pred_region
            // Predicated region
            $region82: #{hallucinated_forward.1} parent=80 // pred_check
              _
            $region83: #{hallucinated_forward.1} parent=80 // pred_check_branch
              %276 = sbr.rel target = $region85
            $region84: #{hallucinated_forward.1} parent=80 // pred_region
              // Predicated region
              $region97: #{hallucinated_forward.1} parent=84 // pred_check
                _
              $region98: #{hallucinated_forward.1} parent=84 // pred_check_branch
                %293 = sbr.rel (0) target = $region100
              $region99: #{hallucinated_forward.1} parent=84 // pred_region
                loop: start=0, step=1, limit=1
                $region101: #{hallucinated_forward.1} parent=99 // loop_pre_header
                  _
                $region102: #{hallucinated_forward.1} parent=99 // loop_header
                  %s295 = sphi 0, %s299
                  %p296 = scmp.ge.s32.totalorder %s295, 1
                  %s300 = sphi %s272, %s272
                  %s301 = sphi %s270, %s270
                $region103: #{hallucinated_forward.1} parent=99 // loop_header_branch
                  %298 = sbr.rel (%p296) target = $region107
                $region104: #{hallucinated_forward.1} parent=99 // loop_body
                  _
                $region105: #{hallucinated_forward.1} parent=99 // loop_footer
                  %s299 = sadd.s32 1, %s295
                $region106: #{hallucinated_forward.1} parent=99 // loop_footer_branch
                  %294 = sbr.rel target = $region102
                $region107: #{hallucinated_forward.1} parent=99 // loop_exit
                  _
                loop: start=0, step=1, limit=1
                $region108: #{hallucinated_forward.1} parent=99 // loop_pre_header
                  _
                $region109: #{hallucinated_forward.1} parent=99 // loop_header
                  %s304 = sphi 0, %s308
                  %p305 = scmp.ge.s32.totalorder %s304, 1
                  %s309 = sphi %s272, %s272
                  %s310 = sphi %s270, %s270
                $region110: #{hallucinated_forward.1} parent=99 // loop_header_branch
                  %307 = sbr.rel (%p305) target = $region114
                $region111: #{hallucinated_forward.1} parent=99 // loop_body
                  %v311 = vld [vmem:[%s309] sm:$0xf]
                  %312 = vst [vmem:[%s310] sm:$0xf] %v311
                  %v313 = vld [vmem:[%s309 + $0x8] sm:$0xf]
                  %314 = vst [vmem:[%s310 + $0x4] sm:$0xf] %v313
                $region112: #{hallucinated_forward.1} parent=99 // loop_footer
                  %s308 = sadd.s32 1, %s304
                $region113: #{hallucinated_forward.1} parent=99 // loop_footer_branch
                  %303 = sbr.rel target = $region109
                $region114: #{hallucinated_forward.1} parent=99 // loop_exit
                  _
              $region100: #{hallucinated_forward.1} parent=84 // pred_fallthru
                _
            $region85: #{hallucinated_forward.1} parent=80 // pred_fallthru
              _
            // Predicated region
            $region86: #{hallucinated_forward.1} parent=80 // pred_check
              _
            $region87: #{hallucinated_forward.1} parent=80 // pred_check_branch
              %278 = sbr.rel (0) target = $region89
            $region88: #{hallucinated_forward.1} parent=80 // pred_region
              loop: start=0, step=1, limit=1
              $region90: #{hallucinated_forward.1} parent=88 // loop_pre_header
                _
              $region91: #{hallucinated_forward.1} parent=88 // loop_header
                %s281 = sphi 0, %s285
                %p282 = scmp.ge.s32.totalorder %s281, 1
                %s286 = sphi %s272, %s272
                %s287 = sphi %s270, %s270
              $region92: #{hallucinated_forward.1} parent=88 // loop_header_branch
                %284 = sbr.rel (%p282) target = $region96
              $region93: #{hallucinated_forward.1} parent=88 // loop_body
                %v288 = vld [vmem:[%s286] sm:$0xf]
                %289 = vst [vmem:[%s287] sm:$0xf] %v288
                %v290 = vld [vmem:[%s286 + $0x8] sm:$0xf]
                %291 = vst [vmem:[%s287 + $0x4] sm:$0xf] %v290
              $region94: #{hallucinated_forward.1} parent=88 // loop_footer
                %s285 = sadd.s32 1, %s281
              $region95: #{hallucinated_forward.1} parent=88 // loop_footer_branch
                %280 = sbr.rel target = $region91
              $region96: #{hallucinated_forward.1} parent=88 // loop_exit
                _
            $region89: #{hallucinated_forward.1} parent=80 // pred_fallthru
              _
          $region81: #{hallucinated_forward.1} parent=76 // pred_fallthru
            _
          %315 = vnop
        $region77: #{hallucinated_forward.1} parent=31 // pred_fallthru
          _
      $region32: #{hallucinated_forward.1} parent=5 // pred_fallthru
        _
      %p316 = scmp.le.s32.totalorder 1, %s15
      %p317 = scmp.lt.s32.totalorder %s15, 3
      %p318 = pnand %p316, %p317
      %p319 = pneg %p318
      // Predicated region
      $region115: #{hallucinated_forward.1} parent=5 // pred_check
        _
      $region116: #{hallucinated_forward.1} parent=5 // pred_check_branch
        %321 = sbr.rel (%p318) target = $region118
      $region117: #{hallucinated_forward.1} parent=5 // pred_region
        %s322 = ssub.s32 %s15, 1
        %s323 = sand.u32 %s28, 1
        %s324 = sand.u32 %s28, 1
        %s325 = smul.addr %s324, 12
        %s326 = scalar_lea.vmem [#allocation2], %s325
        // Predicated region
        $region119: #{hallucinated_forward.1} parent=117 // pred_check
          %p327 = pneg %p41
        $region120: #{hallucinated_forward.1} parent=117 // pred_check_branch
          %329 = sbr.rel (%p327) target = $region122
        $region121: #{hallucinated_forward.1} parent=117 // pred_region
          _
        $region122: #{hallucinated_forward.1} parent=117 // pred_fallthru
          _
        %s330 = sand.u32 %s54, 1
        %s331 = sand.u32 %s54, 1
        %s332 = smul.addr %s331, 8
        %s333 = scalar_lea.vmem [#allocation3], %s332
        // Predicated region
        $region123: #{hallucinated_forward.1} parent=117 // pred_check
          %p334 = pneg %p67
        $region124: #{hallucinated_forward.1} parent=117 // pred_check_branch
          %336 = sbr.rel (%p334) target = $region126
        $region125: #{hallucinated_forward.1} parent=117 // pred_region
          _
        $region126: #{hallucinated_forward.1} parent=117 // pred_fallthru
          _
        %s337 = sand.u32 %s28, 1
        %s338 = sand.u32 %s28, 1
        %s339 = smul.addr %s338, 12
        %s340 = scalar_lea.vmem [#allocation2], %s339
        %p341 = pneg %p41
        %p342 = pneg %p38
        %s343 = sand.u32 %s54, 1
        %s344 = sand.u32 %s54, 1
        %s345 = smul.addr %s344, 8
        %s346 = scalar_lea.vmem [#allocation3], %s345
        %p347 = pneg %p67
        %p348 = pneg %p64
        %p349 = pneg %p88
        %p350 = pneg %p85
        %p351 = pneg %p109
        %p352 = pneg %p106
        %p353 = pneg %p130
        %p354 = pneg %p127
        %p355 = pneg %p151
        %p356 = pneg %p148
        %p357 = pneg %p177
        %p358 = pneg %p174
        %s359 = sand.u32 %s164, 1
        %s360 = scalar_lea.sflag [#allocation5], %s359
        %s361 = sand.u32 %s164, 1
        %s362 = smul.addr %s361, 16
        %s363 = scalar_lea.vmem [#allocation4], %s362
        %v365 = vld [vmem:[%s2] sm:$0xf]
        %v366 = vld [vmem:[%s2 + $0x4] sm:$0xf]
        %v367 = vld [vmem:[%s2 + $0x8] sm:$0xf]
        %v368 = vld [vmem:[%s2 + $0xc] sm:$0xf]
        %v369 = vld [vmem:[%s326] sm:$0xf]
        %v370 = vld [vmem:[%s326 + $0x4] sm:$0xf]
        %v371 = vld [vmem:[%s326 + $0x8] sm:$0x3]
        %v372 = vld [vmem:[%s3] sm:$0xff]
        %v373 = vld [vmem:[%s3 + $0x8] sm:$0xff]
        %v374 = vld [vmem:[%s3 + $0x10] sm:$0xff]
        %v375 = vld [vmem:[%s3 + $0x18] sm:$0xff]
        %377 = vset.pattern.permute.xlu0 0
        %378 = vperm.xlu0 %377, %v372
        %v379 = vpop.permute.xlu0 %378
        %382 = vset.pattern.permute.xlu0 0
        %383 = vperm.xlu0 %382, %v373
        %v384 = vpop.permute.xlu0 %383
        %387 = vset.pattern.permute.xlu0 0
        %388 = vperm.xlu0 %387, %v374
        %v389 = vpop.permute.xlu0 %388
        %392 = vset.pattern.permute.xlu0 0
        %393 = vperm.xlu0 %392, %v375
        %v394 = vpop.permute.xlu0 %393
        %v400 = vunpack.c.l.b16 %v365
        %v401 = vunpack.c.l.b16 %v366
        %v402 = vunpack.c.l.b16 %v367
        %v403 = vunpack.c.l.b16 %v368
        %v404 = vpack.c.b16 %v401, %v400
        %v405 = vpack.c.b16 %v403, %v402
        %v409 = vunpack.c.l.b16 %v369
        %v410 = vunpack.c.l.b16 %v370
        %v411 = vunpack.c.l.b16 %v371
        %v412 = vpack.c.b16 %v410, %v409
        %v413 = vpack.c.b16 %v411, %v411
        %vm415 = vcmask 162816
        %v417 = vsel %vm415, %v404, 0
        %v420 = vsel %vm415, %v405, 0
        %vm422 = vcmask 1041408
        %v424 = vsel %vm422, %v413, 0
        %426 = vmatprep.subr.bf16.mxu0 0
        %427 = vmatpush1.bf16.msra.mxu0 %v412
        %428 = vmatprep.subr.bf16.mxu0 0
        %429 = vmatpush1.bf16.msra.mxu0 %v424
        %430 = vmatprep.subr.bf16.mxu0 0
        %431 = vmatpush1.bf16.msra.mxu0 0
        %432 = vmatprep.subr.bf16.mxu0 0
        %433 = vmatpush1.bf16.msra.mxu0 0
        %434 = vmatprep.subr.bf16.mxu0 0
        %435 = vmatpush1.bf16.msra.mxu0 0
        %436 = vmatprep.subr.bf16.mxu0 0
        %437 = vmatpush1.bf16.msra.mxu0 0
        %438 = vmatprep.subr.bf16.mxu0 0
        %439 = vmatpush1.bf16.msra.mxu0 0
        %440 = vmatprep.subr.bf16.mxu0 0
        %441 = vmatpush1.bf16.msra.mxu0 0
        %442 = vmatprep.subr.bf16.mxu0 0
        %443 = vmatpush1.bf16.msra.mxu0 0
        %444 = vmatprep.subr.bf16.mxu0 0
        %445 = vmatpush1.bf16.msra.mxu0 0
        %446 = vmatprep.subr.bf16.mxu0 0
        %447 = vmatpush1.bf16.msra.mxu0 0
        %448 = vmatprep.subr.bf16.mxu0 0
        %449 = vmatpush1.bf16.msra.mxu0 0
        %450 = vmatprep.subr.bf16.mxu0 0
        %451 = vmatpush1.bf16.msra.mxu0 0
        %452 = vmatprep.subr.bf16.mxu0 0
        %453 = vmatpush1.bf16.msra.mxu0 0
        %454 = vmatprep.subr.bf16.mxu0 0
        %455 = vmatpush1.bf16.msra.mxu0 0
        %456 = vmatprep.subr.bf16.mxu0 0
        %457 = vmatpush1.bf16.msra.mxu0 0
        %458 = vmatprep.mubr.bf16.mxu0 0
        %459 = vmatmul.mubr.bf16.gmra.mrb[0].mxu0 %v417
        %v460 = vpop.f32.mrb[0].mxu0
        %v461 = vadd.f32 %v379, %v460
        %v462 = vpop.f32.mrb[0].mxu0
        %v463 = vpop.f32.mrb[0].mxu0
        %v464 = vadd.f32 %v384, %v463
        %v465 = vpop.f32.mrb[0].mxu0
        %466 = vmatprep.mubr.bf16.mxu0 0
        %467 = vmatmul.mubr.bf16.gmra.mrb[0].mxu0 %v420
        %v468 = vpop.f32.mrb[0].mxu0
        %v469 = vadd.f32 %v389, %v468
        %v470 = vpop.f32.mrb[0].mxu0
        %v471 = vpop.f32.mrb[0].mxu0
        %v472 = vadd.f32 %v394, %v471
        %v473 = vpop.f32.mrb[0].mxu0
        %474 = vdwg.mxu0
        %v475 = vmax.f32 %v461, 0.0
        %v476 = vmax.f32 %v464, 0.0
        %v477 = vmax.f32 %v469, 0.0
        %v478 = vmax.f32 %v472, 0.0
        %v479 = vpack.c.bf16 %v476, %v475
        %v480 = vpack.c.bf16 %v478, %v477
        %v481 = vld [vmem:[%s4] sm:$0xf]
        %v482 = vld [vmem:[%s4 + $0x4] sm:$0xf]
        %v483 = vld [vmem:[%s4 + $0x8] sm:$0xf]
        %v484 = vld [vmem:[%s4 + $0xc] sm:$0xf]
        %v485 = vld [vmem:[%s5] sm:$0xff]
        %v486 = vld [vmem:[%s5 + $0x8] sm:$0xff]
        %v487 = vld [vmem:[%s5 + $0x10] sm:$0xff]
        %v488 = vld [vmem:[%s5 + $0x18] sm:$0xff]
        %490 = vset.pattern.permute.xlu0 0
        %491 = vperm.xlu0 %490, %v485
        %v492 = vpop.permute.xlu0 %491
        %495 = vset.pattern.permute.xlu0 0
        %496 = vperm.xlu0 %495, %v486
        %v497 = vpop.permute.xlu0 %496
        %500 = vset.pattern.permute.xlu0 0
        %501 = vperm.xlu0 %500, %v487
        %v502 = vpop.permute.xlu0 %501
        %505 = vset.pattern.permute.xlu0 0
        %506 = vperm.xlu0 %505, %v488
        %v507 = vpop.permute.xlu0 %506
        %v513 = vunpack.c.l.b16 %v481
        %v514 = vunpack.c.l.b16 %v482
        %v515 = vunpack.c.l.b16 %v483
        %v516 = vunpack.c.l.b16 %v484
        %v517 = vpack.c.b16 %v514, %v513
        %v518 = vpack.c.b16 %v516, %v515
        %vm519 = vcmask 261120
        %v521 = vsel %vm519, %v517, 0
        %v524 = vsel %vm519, %v518, 0
        %526 = vmatprep.subr.bf16.mxu0 0
        %527 = vmatpush1.bf16.msra.mxu0 %v479
        %528 = vmatprep.subr.bf16.mxu0 0
        %529 = vmatpush1.bf16.msra.mxu0 %v480
        %530 = vmatprep.subr.bf16.mxu0 0
        %531 = vmatpush1.bf16.msra.mxu0 0
        %532 = vmatprep.subr.bf16.mxu0 0
        %533 = vmatpush1.bf16.msra.mxu0 0
        %534 = vmatprep.subr.bf16.mxu0 0
        %535 = vmatpush1.bf16.msra.mxu0 0
        %536 = vmatprep.subr.bf16.mxu0 0
        %537 = vmatpush1.bf16.msra.mxu0 0
        %538 = vmatprep.subr.bf16.mxu0 0
        %539 = vmatpush1.bf16.msra.mxu0 0
        %540 = vmatprep.subr.bf16.mxu0 0
        %541 = vmatpush1.bf16.msra.mxu0 0
        %542 = vmatprep.subr.bf16.mxu0 0
        %543 = vmatpush1.bf16.msra.mxu0 0
        %544 = vmatprep.subr.bf16.mxu0 0
        %545 = vmatpush1.bf16.msra.mxu0 0
        %546 = vmatprep.subr.bf16.mxu0 0
        %547 = vmatpush1.bf16.msra.mxu0 0
        %548 = vmatprep.subr.bf16.mxu0 0
        %549 = vmatpush1.bf16.msra.mxu0 0
        %550 = vmatprep.subr.bf16.mxu0 0
        %551 = vmatpush1.bf16.msra.mxu0 0
        %552 = vmatprep.subr.bf16.mxu0 0
        %553 = vmatpush1.bf16.msra.mxu0 0
        %554 = vmatprep.subr.bf16.mxu0 0
        %555 = vmatpush1.bf16.msra.mxu0 0
        %556 = vmatprep.subr.bf16.mxu0 0
        %557 = vmatpush1.bf16.msra.mxu0 0
        %558 = vmatprep.mubr.bf16.mxu0 0
        %559 = vmatmul.mubr.bf16.gmra.mrb[0].mxu0 %v521
        %v560 = vpop.f32.mrb[0].mxu0
        %v561 = vadd.f32 %v492, %v560
        %v562 = vpop.f32.mrb[0].mxu0
        %v563 = vpop.f32.mrb[0].mxu0
        %v564 = vadd.f32 %v497, %v563
        %v565 = vpop.f32.mrb[0].mxu0
        %566 = vmatprep.mubr.bf16.mxu0 0
        %567 = vmatmul.mubr.bf16.gmra.mrb[0].mxu0 %v524
        %v568 = vpop.f32.mrb[0].mxu0
        %v569 = vadd.f32 %v502, %v568
        %v570 = vpop.f32.mrb[0].mxu0
        %v571 = vpop.f32.mrb[0].mxu0
        %v572 = vadd.f32 %v507, %v571
        %v573 = vpop.f32.mrb[0].mxu0
        %574 = vdwg.mxu0
        %vm575 = vcmp.gt.f32.partialorder %v569, 20.0
        %vm576 = vcmp.gt.f32.partialorder %v572, 20.0
        %v577 = vmin.f32 %v569, 20.0
        %v578 = vmin.f32 %v572, 20.0
        %v579 = vmul.f32 %v577, 1.442695
        %v580 = vpow.pop %v579
        %v581 = vmul.f32 %v578, 1.442695
        %v582 = vpow.pop %v581
        %v583 = vadd.f32 %v580, 1.0
        %v584 = vlog2.pop %v583
        %v585 = vmul.f32 %v584, 0.6931472
        %v586 = vmul.f32 -0.5, %v580
        %v587 = vadd.f32 %v586, 1.0
        %v588 = vmul.f32 %v587, %v580
        %v589 = vand.u32 2147483647, %v580
        %vm590 = vcmp.lt.f32.partialorder %v589, 0.0004427343
        %v591 = vsel %vm590, %v588, %v585
        %v592 = vadd.f32 %v582, 1.0
        %v593 = vlog2.pop %v592
        %v594 = vmul.f32 %v593, 0.6931472
        %v595 = vmul.f32 -0.5, %v582
        %v596 = vadd.f32 %v595, 1.0
        %v597 = vmul.f32 %v596, %v582
        %v598 = vand.u32 2147483647, %v582
        %vm599 = vcmp.lt.f32.partialorder %v598, 0.0004427343
        %v600 = vsel %vm599, %v597, %v594
        %v601 = vsel %vm575, %v569, %v591
        %v602 = vsel %vm576, %v572, %v600
        %v603 = vld [vmem:[%s333] sm:$0xf]
        %v604 = vld [vmem:[%s333 + $0x4] sm:$0xf]
        %v605 = vunpack.c.l.bf16 %v603
        %v606 = vunpack.c.l.bf16 %v604
        %v607 = vmax.f32 %v605, -1.0
        %v608 = vmax.f32 %v606, -1.0
        %v609 = vmin.f32 %v607, 1.0
        %v610 = vmin.f32 %v608, 1.0
        %v611 = vrsqrt.pop %v601
        %v612 = vmul.f32 %v601, %v611
        %vm613 = vcmp.eq.f32.partialorder %v601, inf
        %v614 = vsel %vm613, %v601, %v612
        %vm615 = vcmp.eq.f32.partialorder %v601, 0.0
        %v616 = vand.u32 %v601, 2147483648
        %v617 = vsel %vm615, %v616, %v614
        %v618 = vrsqrt.pop %v602
        %v619 = vmul.f32 %v602, %v618
        %vm620 = vcmp.eq.f32.partialorder %v602, inf
        %v621 = vsel %vm620, %v602, %v619
        %vm622 = vcmp.eq.f32.partialorder %v602, 0.0
        %v623 = vand.u32 %v602, 2147483648
        %v624 = vsel %vm622, %v623, %v621
        %v625 = vmul.f32 %v609, %v617
        %v626 = vmul.f32 %v610, %v624
        %v627 = vadd.f32 %v561, %v625
        %v628 = vadd.f32 %v564, %v626
        %629 = vst [vmem:[%s363] sm:$0xff] %v627
        %630 = vst [vmem:[%s363 + $0x8] sm:$0xff] %v628
        %s631 = sand.u32 %s164, 1
        %s632 = scalar_lea.sflag [#allocation5], %s631
        %s633 = sand.u32 %s164, 1
        %s634 = smul.addr %s633, 16
        %s635 = scalar_lea.vmem [#allocation4], %s634
        // Predicated region
        $region127: #{hallucinated_forward.1} parent=117 // pred_check
          %p636 = pneg %p174
        $region128: #{hallucinated_forward.1} parent=117 // pred_check_branch
          %638 = sbr.rel (%p636) target = $region130
        $region129: #{hallucinated_forward.1} parent=117 // pred_region
          %s640 = ssub.s32 256, 256
          %641 = vsyncadd %s632, %s640
          %s642 = smul.addr %s20, 128
          %s643 = scalar_lea.hbm %s6, %s642
          %s644 = sshll.u32 %s635, 4
          %s645 = int_to_ptr.vmem [resolvable:$true] %s644
          %650 = dma.vmem_to_hbm [thread:$0]  %s645, 256, %s643, %s632, 128, 256, 8
        $region130: #{hallucinated_forward.1} parent=117 // pred_fallthru
          _
      $region118: #{hallucinated_forward.1} parent=5 // pred_fallthru
        _
      %p651 = scmp.le.s32.totalorder 2, %s15
      // Predicated region
      $region131: #{hallucinated_forward.1} parent=5 // pred_check
        %p652 = pneg %p651
      $region132: #{hallucinated_forward.1} parent=5 // pred_check_branch
        %654 = sbr.rel (%p652) target = $region134
      $region133: #{hallucinated_forward.1} parent=5 // pred_region
        %s655 = ssub.s32 %s15, 2
        // Predicated region
        $region135: #{hallucinated_forward.1} parent=133 // pred_check
          %p656 = pneg %p180
        $region136: #{hallucinated_forward.1} parent=133 // pred_check_branch
          %658 = sbr.rel (%p656) target = $region138
        $region137: #{hallucinated_forward.1} parent=133 // pred_region
          %s659 = sand.u32 %s165, 1
          %s660 = scalar_lea.sflag [#allocation5], %s659
          %s661 = sand.u32 %s165, 1
          %s662 = smul.addr %s661, 16
          %s663 = scalar_lea.vmem [#allocation4], %s662
          %664 = dma.done %s660, 256
        $region138: #{hallucinated_forward.1} parent=133 // pred_fallthru
          _
      $region134: #{hallucinated_forward.1} parent=5 // pred_fallthru
        _
    $region6: #{hallucinated_forward.1} parent=1 // loop_footer
      %s19 = sadd.s32 1, %s15
    $region7: #{hallucinated_forward.1} parent=1 // loop_footer_branch
      %14 = sbr.rel target = $region3
    $region8: #{hallucinated_forward.1} parent=1 // loop_exit
      _
    %665 = vsyncpa [#allocation5], 1
    %s666 = scalar_lea.sflag [#allocation5], 1
    %667 = vsyncpa %s666, 1

</llo_original>
